<compile_context>
chip_gen: v5e
topology: v5e:2x2
jax: 0.10.0
libtpu: 0.0.40
codegen_flags: <defaults>
</compile_context>

<pallas_src>
import jax
import jax.numpy as jnp
from jax.experimental import pallas as pl
from jax.experimental.pallas import tpu as pltpu


def _round_up(x, m):
    return (x + m - 1) // m * m


def _pick_tile(m_pad, block_m, min_steps=2):
    """Largest multiple-of-128 row tile that divides m_pad, is <= block_m and
    (when possible) leaves >= min_steps grid steps for v7x's two TensorCores.
    Pathological (prime) m_pad/128 falls back to small tiles but stays correct.
    """
    q = m_pad // 128
    cap = max(1, min(block_m // 128, q))
    if q >= min_steps:
        cap = max(1, min(cap, q // min_steps))
    d = cap
    while q % d:
        d -= 1
    return d * 128


def mlp_kernel(x_ref, w1t_ref, b1_ref, w2_ref, b2_ref, out_ref):
    # x_ref:   [TM, K]  (object rows for this grid step; bf16 on default path)
    # w1t_ref: [H, K]   b1_ref: [H, 1] (f32)
    # w2_ref:  [H, O]   b2_ref: [O, 1] (both f32 -- layer 2 runs on the VPU)
    # out_ref: [O, TM]  (transposed: objects on the lane axis -> lane-dense)
    x = x_ref[...]
    w1t = w1t_ref[...]
    # Exact f32 matmul on the debug path; bf16 inputs are MXU-native and the
    # precision flag is a no-op there.
    prec = (jax.lax.Precision.HIGHEST
            if x.dtype == jnp.float32 else jax.lax.Precision.DEFAULT)
    # h_t[j, m] = sum_k w1[k, j] * x[m, k]  -- contract the K dims of both
    # operands so no pre-transpose of x is needed and the lane axis becomes
    # the object dim.
    h_t = jax.lax.dot_general(
        w1t, x,
        dimension_numbers=(((1,), (1,)), ((), ())),
        precision=prec,
        preferred_element_type=jnp.float32)               # [H, TM], f32
    h_t = jnp.maximum(h_t + b1_ref[...], 0.0)             # bias + ReLU in f32

    # Layer 2 (O=2 output rows) off the MXU: per-row broadcast-multiply +
    # sublane reduction on the VPU/XLU, h_t stays f32 (no extra downcast).
    O = out_ref.shape[0]
    rows = []
    for o in range(O):                                    # O is tiny & static
        w_col = w2_ref[:, o:o + 1]                        # [H, 1], f32
        rows.append(jnp.sum(w_col * h_t, axis=0, keepdims=True))   # [1, TM]
    y_t = jnp.concatenate(rows, axis=0) + b2_ref[...]     # [O, TM], f32
    out_ref[...] = y_t.astype(out_ref.dtype)


def object_model_forward(x, w1, b1, w2, b2, *, block_m=16384,
                         compute_dtype=jnp.bfloat16, transposed_output=False):
    """x: [B, N, input_size] -> [B, N, output_size] (matches PyTorch forward).

    compute_dtype: dtype for the streamed x and layer-1 weights (default bf16,
    MXU-native; pass None for an exact-f32 debug path).  Accumulation, biases,
    ReLU and layer 2 are always f32.  transposed_output=True returns the
    lane-dense (output_size, B*N) array for downstream fusion.
    """
    assert block_m % 128 == 0, "block_m must be a multiple of 128 (lane axis)"
    B, N, K = x.shape
    H = w1.shape[1]
    O = w2.shape[1]
    M = B * N

    x2d = x.reshape(M, K)                      # same as x.view(-1, input_size)
    if compute_dtype is not None:
        x2d = x2d.astype(compute_dtype)
        w1 = w1.astype(compute_dtype)

    w1t = w1.T                                 # (H, K) -- layer 1 on the MXU
    w2c = w2.astype(jnp.float32)               # (H, O) -- layer 2 on the VPU
    b1c = b1.reshape(H, 1).astype(jnp.float32)
    b2c = b2.reshape(O, 1).astype(jnp.float32)

    # Pad rows only to the next multiple of 128 (<=127 junk rows), then pick a
    # tile that exactly divides the padded extent (>=2 steps when possible so
    # v7x shards across both TensorCores).
    m_pad = _round_up(M, 128)
    tm = _pick_tile(m_pad, block_m)
    if m_pad != M:
        x2d = jnp.pad(x2d, ((0, m_pad - M), (0, 0)))

    in_bytes = x2d.dtype.itemsize
    cost = pl.CostEstimate(
        flops=2 * m_pad * (K * H + H * O),
        transcendentals=0,
        bytes_accessed=(m_pad * (K * in_bytes + O * 4)
                        + K * H * in_bytes + (H * O + H + O) * 4))

    out_t = pl.pallas_call(
        mlp_kernel,
        out_shape=jax.ShapeDtypeStruct((O, m_pad), jnp.float32),
        grid=(m_pad // tm,),
        in_specs=[
            pl.BlockSpec((tm, K), lambda i: (i, 0)),   # x tiles stream over M
            pl.BlockSpec((H, K), lambda i: (0, 0)),    # weights stay resident
            pl.BlockSpec((H, 1), lambda i: (0, 0)),
            pl.BlockSpec((H, O), lambda i: (0, 0)),
            pl.BlockSpec((O, 1), lambda i: (0, 0)),
        ],
        out_specs=pl.BlockSpec((O, tm), lambda i: (0, i)),
        compiler_params=pltpu.CompilerParams(
            dimension_semantics=("parallel",)),
        cost_estimate=cost,
    )(x2d, w1t, b1c, w2c, b2c)

    if transposed_output:
        return out_t[:, :M]                    # (O, M) lane-dense, fuse downstream
    out2d = out_t.T[:M]                        # tiny (M, O) transpose outside
    return out2d.reshape(B, N, O)              # x.view(batch_size, n, output)


def init_params(key, input_size, hidden_size, output_size):
    """Deterministic synthetic init (PyTorch-Linear-like uniform ranges)."""
    k1, k2, k3, k4 = jax.random.split(key, 4)
    bound1 = 1.0 / (input_size ** 0.5)
    bound2 = 1.0 / (hidden_size ** 0.5)
    w1 = jax.random.uniform(k1, (input_size, hidden_size), jnp.float32,
                            -bound1, bound1)
    b1 = jax.random.uniform(k2, (hidden_size,), jnp.float32, -bound1, bound1)
    w2 = jax.random.uniform(k3, (hidden_size, output_size), jnp.float32,
                            -bound2, bound2)
    b2 = jax.random.uniform(k4, (output_size,), jnp.float32, -bound2, bound2)
    return w1, b1, w2, b2


def _ref_forward(x, w1, b1, w2, b2):
    B, N, K = x.shape
    y = jnp.maximum(x.reshape(-1, K) @ w1 + b1, 0.0) @ w2 + b2
    return y.reshape(B, N, w2.shape[1])


if __name__ == "__main__":
    # ObjectModel(input_size=32, output_size=2, hidden_size=32)
    B, N, INPUT_SIZE, HIDDEN_SIZE, OUTPUT_SIZE = 2, 8, 32, 32, 2

    key = jax.random.PRNGKey(0)
    kx, kp, kx2 = jax.random.split(key, 3)
    x = jax.random.normal(kx, (B, N, INPUT_SIZE), jnp.float32)
    w1, b1, w2, b2 = init_params(kp, INPUT_SIZE, HIDDEN_SIZE, OUTPUT_SIZE)
    ref = _ref_forward(x, w1, b1, w2, b2)

    # Default path: bf16 x / layer-1 weights, f32 accumulation + f32 layer 2.
    out = jax.block_until_ready(object_model_forward(x, w1, b1, w2, b2))
    assert out.shape == (B, N, OUTPUT_SIZE)
    assert jnp.allclose(out, ref, atol=5e-2, rtol=5e-2)

    # f32 debug path (Precision.HIGHEST in-kernel): exact match.
    out_f32 = jax.block_until_ready(
        object_model_forward(x, w1, b1, w2, b2, compute_dtype=None))
    assert jnp.allclose(out_f32, ref, atol=1e-5, rtol=1e-5)

    # Multi-step grid exercise (M=1280 -> tm=640, 2 "parallel" steps); also
    # checks the transposed (lane-dense) output path.
    B2, N2 = 4, 320
    x2 = jax.random.normal(kx2, (B2, N2, INPUT_SIZE), jnp.float32)
    ref2 = _ref_forward(x2, w1, b1, w2, b2)
    out2 = jax.block_until_ready(object_model_forward(x2, w1, b1, w2, b2))
    assert jnp.allclose(out2, ref2, atol=5e-2, rtol=5e-2)
    out2_t = jax.block_until_ready(
        object_model_forward(x2, w1, b1, w2, b2, transposed_output=True))
    assert out2_t.shape == (OUTPUT_SIZE, B2 * N2)
    assert jnp.allclose(out2_t.T.reshape(B2, N2, OUTPUT_SIZE), ref2,
                        atol=5e-2, rtol=5e-2)

    print("KERNEL_OK")
</pallas_src>

<mosaic_0001>
module attributes {stable_mosaic.version = 11 : i64} {
  func.func @mlp_kernel(%arg0: i32, %arg1: memref<128x32xbf16, #tpu.memory_space<vmem>>, %arg2: memref<32x32xbf16, #tpu.memory_space<vmem>>, %arg3: memref<32x1xf32, #tpu.memory_space<vmem>>, %arg4: memref<32x2xf32, #tpu.memory_space<vmem>>, %arg5: memref<2x1xf32, #tpu.memory_space<vmem>>, %arg6: memref<2x128xf32, #tpu.memory_space<vmem>>) attributes {dimension_semantics = [#tpu.dimension_semantics<parallel>], iteration_bounds = array<i64: 1>, scalar_prefetch = 0 : i64, scratch_operands = 0 : i64, tpu.core_type = #tpu.core_type<tc>, window_params = [{transform_indices = @transform_0, window_bounds = array<i64: 128, 32>}, {pipeline_mode = #tpu.pipeline_mode<synchronous>, transform_indices = @transform_1, window_bounds = array<i64: 32, 32>}, {pipeline_mode = #tpu.pipeline_mode<synchronous>, transform_indices = @transform_2, window_bounds = array<i64: 32, 1>}, {pipeline_mode = #tpu.pipeline_mode<synchronous>, transform_indices = @transform_3, window_bounds = array<i64: 32, 2>}, {pipeline_mode = #tpu.pipeline_mode<synchronous>, transform_indices = @transform_4, window_bounds = array<i64: 2, 1>}, {transform_indices = @transform_5, window_bounds = array<i64: 2, 128>}]} {
    %c0 = arith.constant 0 : index
    %c0_0 = arith.constant 0 : index
    %0 = vector.load %arg1[%c0, %c0_0] : memref<128x32xbf16, #tpu.memory_space<vmem>>, vector<128x32xbf16>
    %c0_1 = arith.constant 0 : index
    %c0_2 = arith.constant 0 : index
    %1 = vector.load %arg2[%c0_1, %c0_2] : memref<32x32xbf16, #tpu.memory_space<vmem>>, vector<32x32xbf16>
    %cst = arith.constant dense<0.000000e+00> : vector<32x128xf32>
    %2 = tpu.matmul %1, %0, %cst {dimension_numbers = #tpu.dot_dimension_numbers<[1], [1], [0], [0], [0, 0, 1, 0], [], []>} : vector<32x32xbf16>, vector<128x32xbf16>, vector<32x128xf32> -> vector<32x128xf32>
    %c0_3 = arith.constant 0 : index
    %c0_4 = arith.constant 0 : index
    %3 = vector.load %arg3[%c0_3, %c0_4] : memref<32x1xf32, #tpu.memory_space<vmem>>, vector<32x1xf32>
    %4 = vector.broadcast %3 : vector<32x1xf32> to vector<32x128xf32>
    %5 = arith.addf %2, %4 : vector<32x128xf32>
    %cst_5 = arith.constant 0.000000e+00 : f32
    %6 = vector.broadcast %cst_5 : f32 to vector<32x128xf32>
    %7 = arith.maximumf %5, %6 : vector<32x128xf32>
    %c0_6 = arith.constant 0 : index
    %c0_7 = arith.constant 0 : index
    %8 = vector.load %arg4[%c0_6, %c0_7] : memref<32x2xf32, #tpu.memory_space<vmem>>, vector<32x1xf32>
    %9 = vector.broadcast %8 : vector<32x1xf32> to vector<32x128xf32>
    %10 = arith.mulf %9, %7 : vector<32x128xf32>
    %cst_8 = arith.constant dense<0.000000e+00> : vector<128xf32>
    %11 = vector.multi_reduction <add>, %10, %cst_8 [0] : vector<32x128xf32> to vector<128xf32>
    %12 = vector.shape_cast %11 : vector<128xf32> to vector<1x128xf32>
    %c0_9 = arith.constant 0 : index
    %c1 = arith.constant 1 : index
    %13 = vector.load %arg4[%c0_9, %c1] : memref<32x2xf32, #tpu.memory_space<vmem>>, vector<32x1xf32>
    %14 = vector.broadcast %13 : vector<32x1xf32> to vector<32x128xf32>
    %15 = arith.mulf %14, %7 : vector<32x128xf32>
    %cst_10 = arith.constant dense<0.000000e+00> : vector<128xf32>
    %16 = vector.multi_reduction <add>, %15, %cst_10 [0] : vector<32x128xf32> to vector<128xf32>
    %17 = vector.shape_cast %16 : vector<128xf32> to vector<1x128xf32>
    %18 = tpu.concatenate %12, %17 in 0 : vector<1x128xf32>, vector<1x128xf32> -> vector<2x128xf32>
    %c0_11 = arith.constant 0 : index
    %c0_12 = arith.constant 0 : index
    %19 = vector.load %arg5[%c0_11, %c0_12] : memref<2x1xf32, #tpu.memory_space<vmem>>, vector<2x1xf32>
    %20 = vector.broadcast %19 : vector<2x1xf32> to vector<2x128xf32>
    %21 = arith.addf %18, %20 : vector<2x128xf32>
    %c0_13 = arith.constant 0 : index
    %c0_14 = arith.constant 0 : index
    %22 = vector.load %arg6[%c0_13, %c0_14] : memref<2x128xf32, #tpu.memory_space<vmem>>, vector<2x128xf32>
    tpu.vector_store %arg6[%c0_13, %c0_14], %21 {strides = array<i32>} : memref<2x128xf32, #tpu.memory_space<vmem>>, vector<2x128xf32>,
    return
  }
  func.func @transform_0(%arg0: i32) -> (i32, i32) {
    %c0_i32 = arith.constant 0 : i32
    %c0_i32_0 = arith.constant 0 : i32
    return %arg0, %c0_i32 : i32, i32
  }
  func.func @transform_1(%arg0: i32) -> (i32, i32) {
    %c0_i32 = arith.constant 0 : i32
    %c0_i32_0 = arith.constant 0 : i32
    %c0_i32_1 = arith.constant 0 : i32
    return %c0_i32, %c0_i32_0 : i32, i32
  }
  func.func @transform_2(%arg0: i32) -> (i32, i32) {
    %c0_i32 = arith.constant 0 : i32
    %c0_i32_0 = arith.constant 0 : i32
    %c0_i32_1 = arith.constant 0 : i32
    return %c0_i32, %c0_i32_0 : i32, i32
  }
  func.func @transform_3(%arg0: i32) -> (i32, i32) {
    %c0_i32 = arith.constant 0 : i32
    %c0_i32_0 = arith.constant 0 : i32
    %c0_i32_1 = arith.constant 0 : i32
    return %c0_i32, %c0_i32_0 : i32, i32
  }
  func.func @transform_4(%arg0: i32) -> (i32, i32) {
    %c0_i32 = arith.constant 0 : i32
    %c0_i32_0 = arith.constant 0 : i32
    %c0_i32_1 = arith.constant 0 : i32
    return %c0_i32, %c0_i32_0 : i32, i32
  }
  func.func @transform_5(%arg0: i32) -> (i32, i32) {
    %c0_i32 = arith.constant 0 : i32
    %c0_i32_0 = arith.constant 0 : i32
    return %c0_i32, %arg0 : i32, i32
  }
}

</mosaic_0001>

<llo_original>
// kernel: tpu_custom_call.1
$region0: #{tpu_custom_call.1}
  #allocation0 [shape = 'u32[]', space=smem, size = 0x4, offset = 0x4, fixed_abs, tag = 'smem constant byte address 0x4 - core index']
  #allocation1 [shape = 'u32[72,128]{1,0:T(1,128)}', space=vmem, size = 0x9000, scoped, tag = 'internal scratch']
  %s0 = inlined_call_operand.vmem [shape: bf16[128,32], index: 0, kind: input, shape index: {}]
  %s1 = inlined_call_operand.vmem [shape: bf16[32,32], index: 1, kind: input, shape index: {}]
  %s2 = inlined_call_operand.vmem [shape: f32[32,1], index: 2, kind: input, shape index: {}]
  %s3 = inlined_call_operand.vmem [shape: f32[32,2], index: 3, kind: input, shape index: {}]
  %s4 = inlined_call_operand.vmem [shape: f32[2,1], index: 4, kind: input, shape index: {}]
  %s5 = inlined_call_operand.hbm [shape: f32[2,128], index: 5, kind: output, shape index: {}]
  %s6 = sld [smem:[#allocation0]]
  $region30: #{tpu_custom_call.1} parent=0
    _
  %s8 = ssub.s32 1, %s6
  %s9 = scalar_select 0, %s8, %s6
  $region1: #{tpu_custom_call.1} parent=0
    #allocation2 [shape = 'u8[1024]{0}', space=vmem, size = 0x400, scoped, tag = 'output window, operand 0, single buffered']
    #allocation3 [shape = 's32[1]{0}', space=sflag, size = 0x4, scoped, tag = 'scoped memory for tpu_custom_call.1']
    %10 = vsyncpa [#allocation3], 0
    // Predicated region
    $region2: #{tpu_custom_call.1} parent=1 // pred_check
      _
    $region3: #{tpu_custom_call.1} parent=1 // pred_check_branch
      %12 = sbr.rel (0) target = $region5
    $region4: #{tpu_custom_call.1} parent=1 // pred_region
      _
    $region5: #{tpu_custom_call.1} parent=1 // pred_fallthru
      _
    // Predicated region
    $region6: #{tpu_custom_call.1} parent=1 // pred_check
      _
    $region7: #{tpu_custom_call.1} parent=1 // pred_check_branch
      %14 = sbr.rel (0) target = $region9
    $region8: #{tpu_custom_call.1} parent=1 // pred_region
      _
    $region9: #{tpu_custom_call.1} parent=1 // pred_fallthru
      _
    // Predicated region
    $region10: #{tpu_custom_call.1} parent=1 // pred_check
      _
    $region11: #{tpu_custom_call.1} parent=1 // pred_check_branch
      %16 = sbr.rel (0) target = $region13
    $region12: #{tpu_custom_call.1} parent=1 // pred_region
      _
    $region13: #{tpu_custom_call.1} parent=1 // pred_fallthru
      _
    // Predicated region
    $region14: #{tpu_custom_call.1} parent=1 // pred_check
      _
    $region15: #{tpu_custom_call.1} parent=1 // pred_check_branch
      %18 = sbr.rel (0) target = $region17
    $region16: #{tpu_custom_call.1} parent=1 // pred_region
      _
    $region17: #{tpu_custom_call.1} parent=1 // pred_fallthru
      _
    // Predicated region
    $region18: #{tpu_custom_call.1} parent=1 // pred_check
      _
    $region19: #{tpu_custom_call.1} parent=1 // pred_check_branch
      %20 = sbr.rel (0) target = $region21
    $region20: #{tpu_custom_call.1} parent=1 // pred_region
      _
    $region21: #{tpu_custom_call.1} parent=1 // pred_fallthru
      _
    %v21 = vld [vmem:[%s0] sm:$0xf]
    %v22 = vld [vmem:[%s0 + $0x4] sm:$0xf]
    %v23 = vld [vmem:[%s0 + $0x8] sm:$0xf]
    %v24 = vld [vmem:[%s0 + $0xc] sm:$0xf]
    %v25 = vld [vmem:[%s0 + $0x10] sm:$0xf]
    %v26 = vld [vmem:[%s0 + $0x14] sm:$0xf]
    %v27 = vld [vmem:[%s0 + $0x18] sm:$0xf]
    %v28 = vld [vmem:[%s0 + $0x1c] sm:$0xf]
    %v29 = vld [vmem:[%s0 + $0x20] sm:$0xf]
    %v30 = vld [vmem:[%s0 + $0x24] sm:$0xf]
    %v31 = vld [vmem:[%s0 + $0x28] sm:$0xf]
    %v32 = vld [vmem:[%s0 + $0x2c] sm:$0xf]
    %v33 = vld [vmem:[%s0 + $0x30] sm:$0xf]
    %v34 = vld [vmem:[%s0 + $0x34] sm:$0xf]
    %v35 = vld [vmem:[%s0 + $0x38] sm:$0xf]
    %v36 = vld [vmem:[%s0 + $0x3c] sm:$0xf]
    %v37 = vld [vmem:[%s1] sm:$0xf]
    %v38 = vld [vmem:[%s1 + $0x4] sm:$0xf]
    %v39 = vld [vmem:[%s1 + $0x8] sm:$0xf]
    %v40 = vld [vmem:[%s1 + $0xc] sm:$0xf]
    %v41 = vld [vmem:[%s2] sm:$0xff]
    %v42 = vld [vmem:[%s2 + $0x8] sm:$0xff]
    %v43 = vld [vmem:[%s2 + $0x10] sm:$0xff]
    %v44 = vld [vmem:[%s2 + $0x18] sm:$0xff]
    %46 = vset.pattern.permute.xlu0 0
    %47 = vperm.xlu0 %46, %v41
    %v48 = vpop.permute.xlu0 %47
    %51 = vset.pattern.permute.xlu0 0
    %52 = vperm.xlu0 %51, %v42
    %v53 = vpop.permute.xlu0 %52
    %56 = vset.pattern.permute.xlu0 0
    %57 = vperm.xlu0 %56, %v43
    %v58 = vpop.permute.xlu0 %57
    %61 = vset.pattern.permute.xlu0 0
    %62 = vperm.xlu0 %61, %v44
    %v63 = vpop.permute.xlu0 %62
    %v69 = vunpack.c.l.b16 %v37
    %v70 = vunpack.c.l.b16 %v38
    %v71 = vunpack.c.l.b16 %v39
    %v72 = vunpack.c.l.b16 %v40
    %v73 = vpack.c.b16 %v70, %v69
    %v74 = vpack.c.b16 %v72, %v71
    %v91 = vunpack.c.l.b16 %v21
    %v92 = vunpack.c.l.b16 %v22
    %v93 = vunpack.c.l.b16 %v23
    %v94 = vunpack.c.l.b16 %v24
    %v95 = vunpack.c.l.b16 %v25
    %v96 = vunpack.c.l.b16 %v26
    %v97 = vunpack.c.l.b16 %v27
    %v98 = vunpack.c.l.b16 %v28
    %v99 = vunpack.c.l.b16 %v29
    %v100 = vunpack.c.l.b16 %v30
    %v101 = vunpack.c.l.b16 %v31
    %v102 = vunpack.c.l.b16 %v32
    %v103 = vunpack.c.l.b16 %v33
    %v104 = vunpack.c.l.b16 %v34
    %v105 = vunpack.c.l.b16 %v35
    %v106 = vunpack.c.l.b16 %v36
    %v107 = vpack.c.b16 %v92, %v91
    %v108 = vpack.c.b16 %v94, %v93
    %v109 = vpack.c.b16 %v96, %v95
    %v110 = vpack.c.b16 %v98, %v97
    %v111 = vpack.c.b16 %v100, %v99
    %v112 = vpack.c.b16 %v102, %v101
    %v113 = vpack.c.b16 %v104, %v103
    %v114 = vpack.c.b16 %v106, %v105
    %vm115 = vcmask 261120
    %v117 = vsel %vm115, %v73, 0
    %v120 = vsel %vm115, %v74, 0
    %v123 = vsel %vm115, %v107, 0
    %v126 = vsel %vm115, %v108, 0
    %v129 = vsel %vm115, %v109, 0
    %v132 = vsel %vm115, %v110, 0
    %v135 = vsel %vm115, %v111, 0
    %v138 = vsel %vm115, %v112, 0
    %v141 = vsel %vm115, %v113, 0
    %v144 = vsel %vm115, %v114, 0
    %146 = vmatpush.bf16.xpose.msra.mxu0 %v144
    %147 = vmatpush.bf16.xpose.msra.mxu0 %v141
    %148 = vmatpush.bf16.xpose.msra.mxu0 %v138
    %149 = vmatpush.bf16.xpose.msra.mxu0 %v135
    %150 = vmatpush.bf16.xpose.msra.mxu0 %v132
    %151 = vmatpush.bf16.xpose.msra.mxu0 %v129
    %152 = vmatpush.bf16.xpose.msra.mxu0 %v126
    %153 = vmatpush.bf16.xpose.msra.mxu0 %v123
    %154 = vmatmul.bf16.gmra.mxu0 %v117
    %v155 = vpop.f32.mrf.mxu0
    %v156 = vadd.f32 %v48, %v155
    %v157 = vpop.f32.mrf.mxu0
    %v158 = vadd.f32 %v53, %v157
    %159 = vmatmul.bf16.gmra.mxu0 %v120
    %v160 = vpop.f32.mrf.mxu0
    %v161 = vadd.f32 %v58, %v160
    %v162 = vpop.f32.mrf.mxu0
    %v163 = vadd.f32 %v63, %v162
    %164 = vdwg.mxu0
    %v165 = vmax.f32 %v156, 0.0
    %v166 = vmax.f32 %v158, 0.0
    %v167 = vmax.f32 %v161, 0.0
    %v168 = vmax.f32 %v163, 0.0
    %v169 = vld [vmem:[%s3] sm:$0xff]
    %v170 = vld [vmem:[%s3 + $0x8] sm:$0xff]
    %v171 = vld [vmem:[%s3 + $0x10] sm:$0xff]
    %v172 = vld [vmem:[%s3 + $0x18] sm:$0xff]
    %174 = vset.pattern.permute.xlu0 0
    %175 = vperm.xlu0 %174, %v169
    %v176 = vpop.permute.xlu0 %175
    %179 = vset.pattern.permute.xlu0 0
    %180 = vperm.xlu0 %179, %v170
    %v181 = vpop.permute.xlu0 %180
    %184 = vset.pattern.permute.xlu0 0
    %185 = vperm.xlu0 %184, %v171
    %v186 = vpop.permute.xlu0 %185
    %189 = vset.pattern.permute.xlu0 0
    %190 = vperm.xlu0 %189, %v172
    %v191 = vpop.permute.xlu0 %190
    %v193 = vmul.f32 %v176, %v165
    %v194 = vmul.f32 %v181, %v166
    %v195 = vmul.f32 %v186, %v167
    %v196 = vmul.f32 %v191, %v168
    %v197 = vadd.f32 %v193, %v194
    %v198 = vadd.f32 %v197, %v195
    %v199 = vadd.f32 %v198, %v196
    %v200 = vrot.slane %v199, 4
    %v201 = vadd.f32 %v199, %v200
    %v202 = vrot.slane %v201, 2
    %v203 = vadd.f32 %v201, %v202
    %v204 = vrot.slane %v203, 1
    %v205 = vadd.f32 %v203, %v204
    %206 = vset.pattern.permute.xlu0 1
    %207 = vperm.xlu0 %206, %v169
    %v208 = vpop.permute.xlu0 %207
    %210 = vset.pattern.permute.xlu0 1
    %211 = vperm.xlu0 %210, %v170
    %v212 = vpop.permute.xlu0 %211
    %214 = vset.pattern.permute.xlu0 1
    %215 = vperm.xlu0 %214, %v171
    %v216 = vpop.permute.xlu0 %215
    %218 = vset.pattern.permute.xlu0 1
    %219 = vperm.xlu0 %218, %v172
    %v220 = vpop.permute.xlu0 %219
    %v222 = vmul.f32 %v208, %v165
    %v223 = vmul.f32 %v212, %v166
    %v224 = vmul.f32 %v216, %v167
    %v225 = vmul.f32 %v220, %v168
    %v226 = vadd.f32 %v222, %v223
    %v227 = vadd.f32 %v226, %v224
    %v228 = vadd.f32 %v227, %v225
    %v229 = vrot.slane %v228, 4
    %v230 = vadd.f32 %v228, %v229
    %v231 = vrot.slane %v230, 2
    %v232 = vadd.f32 %v230, %v231
    %v233 = vrot.slane %v232, 1
    %v234 = vadd.f32 %v232, %v233
    %vm235 = vcmask 1040384
    %v236 = vsel %vm235, %v205, %v234
    %v237 = vld [vmem:[%s4] sm:$0x3]
    %239 = vset.pattern.permute.xlu0 0
    %240 = vperm.xlu0 %239, %v237
    %v241 = vpop.permute.xlu0 %240
    %v243 = vadd.f32 %v236, %v241
    %244 = vst [vmem:[#allocation2] sm:$0x3] %v243
    // Predicated region
    $region22: #{tpu_custom_call.1} parent=1 // pred_check
      _
    $region23: #{tpu_custom_call.1} parent=1 // pred_check_branch
      %246 = sbr.rel (0) target = $region25
    $region24: #{tpu_custom_call.1} parent=1 // pred_region
      %248 = vsyncadd [#allocation3], 0
      %s250 = sshll.u32 [#allocation2], 4
      %s251 = int_to_ptr.vmem [resolvable:$true] %s250
      %s252 = sshll.u32 %s5, 4
      %s253 = int_to_ptr.hbm [resolvable:$true] %s252
      %255 = dma.vmem_to_hbm [thread:$0]  %s251, 32, %s253, [#allocation3]
    $region25: #{tpu_custom_call.1} parent=1 // pred_fallthru
      _
    // Predicated region
    $region26: #{tpu_custom_call.1} parent=1 // pred_check
      _
    $region27: #{tpu_custom_call.1} parent=1 // pred_check_branch
      %257 = sbr.rel (0) target = $region29
    $region28: #{tpu_custom_call.1} parent=1 // pred_region
      %259 = dma.done [#allocation3], 32
    $region29: #{tpu_custom_call.1} parent=1 // pred_fallthru
      _
    %260 = vsyncpa [#allocation3], 1

</llo_original>
